<compile_context>
chip_gen: v7x
topology: tpu7x:2x2x1
jax: 0.10.0
libtpu: 0.0.40
codegen_flags: <defaults>
</compile_context>

<pallas_src>
import functools

import jax
import jax.numpy as jnp
from jax import lax
from jax.experimental import pallas as pl
from jax.experimental.pallas import tpu as pltpu


def _round_up(x: int, m: int) -> int:
    return ((x + m - 1) // m) * m


def _seqlabel_kernel(x_ref, w_ref, b_ref, tag_ref, *, matmul_dtype):
    """hidden2tag Linear -> argmax over labels, for one row tile.

    x_ref:   (TM, D)  input dtype (streamed f32; cast to matmul_dtype in-kernel)
    w_ref:   (D, LP)  matmul_dtype, VMEM-resident, label dim padded to 128
    b_ref:   (1, LP)  f32, VMEM-resident, padded columns = -1e30
    tag_ref: (TM, 1)  i32 raw predicted tag ids (mask gate applied in wrapper)
    """
    # Cast right before the dot (no wrapper-side copy of x); MXU matmul with
    # f32 accumulation, bias add in f32.
    x = x_ref[...].astype(matmul_dtype)
    logits = jnp.dot(x, w_ref[...], preferred_element_type=jnp.float32)  # (TM, LP)
    logits = logits + b_ref[...]

    # argmax over the (padded, full-128-lane) label dim.  First-max tie-break
    # matches torch.max semantics.  Padded columns carry bias -1e30 so they can
    # never win (inputs assumed finite / NaN-free).
    lp = logits.shape[-1]
    maxv = jnp.max(logits, axis=-1, keepdims=True)              # (TM, 1)
    idx = lax.broadcasted_iota(jnp.int32, logits.shape, 1)      # (TM, LP)
    tag_ref[...] = jnp.min(jnp.where(logits == maxv, idx, lp),
                           axis=-1, keepdims=True)              # (TM, 1) i32


def elmo_seqlabel_forward(elmo_repr, mask, W, b, *,
                          row_tile: int | None = None,
                          matmul_dtype=jnp.bfloat16):
    """tag_seq = mask * argmax(hidden2tag(elmo_repr), -1), Pallas-fused.

    elmo_repr: (B, S, D) float   ELMo representation (biLM output)
    mask:      (B, S)    int/bool
    W:         (D, L)    float   hidden2tag weight (in_features, out_features)
    b:         (L,)      float   hidden2tag bias
    returns:   (B, S)    int32

    Pass matmul_dtype=jnp.float32 for torch-exact f32 Linear numerics; the
    bf16 default halves MXU time and is argmax-stable away from near-ties.
    """
    B, S, D = elmo_repr.shape
    L = W.shape[1]
    R = B * S

    # Metadata-only flatten: no copy, no cast, no pad of the big x tensor.
    x = elmo_repr.reshape(R, D)

    # Label dim padded to exactly one full lane group (128); do not widen.
    LP = _round_up(max(L, 128), 128)
    W_pad = jnp.zeros((D, LP), matmul_dtype).at[:, :L].set(W.astype(matmul_dtype))
    b_pad = jnp.full((1, LP), -1e30, jnp.float32).at[0, :L].set(b.astype(jnp.float32))

    # Row tile: target ~4 MiB of x per pipeline buffer, clamp to [256, 2048]
    # (multiple of 8 sublanes), never larger than the (rounded-up) row count.
    if row_tile is None:
        bytes_per_row = max(int(D) * x.dtype.itemsize, 1)
        TM = (4 * 1024 * 1024) // bytes_per_row
        TM = max(256, min(2048, (TM // 256) * 256))
    else:
        TM = row_tile
    TM = min(TM, _round_up(R, 8))

    grid = (pl.cdiv(R, TM),)   # partial tail block: OOB writes masked by Pallas

    cost = pl.CostEstimate(
        flops=2 * R * D * LP,
        transcendentals=0,
        bytes_accessed=int(R * D * x.dtype.itemsize
                           + D * LP * jnp.dtype(matmul_dtype).itemsize
                           + R * 4),
    )

    tag_col = pl.pallas_call(
        functools.partial(_seqlabel_kernel, matmul_dtype=matmul_dtype),
        out_shape=jax.ShapeDtypeStruct((R, 1), jnp.int32),
        grid=grid,
        in_specs=[
            pl.BlockSpec((TM, D), lambda i: (i, 0)),    # x: streamed row tiles
            pl.BlockSpec((D, LP), lambda i: (0, 0)),    # W: VMEM-resident
            pl.BlockSpec((1, LP), lambda i: (0, 0)),    # bias: VMEM-resident
        ],
        out_specs=pl.BlockSpec((TM, 1), lambda i: (i, 0)),
        compiler_params=pltpu.CompilerParams(
            dimension_semantics=("parallel",),          # shards rows on v7x 2-TC
        ),
        cost_estimate=cost,
    )(x, W_pad, b_pad)

    # mask.long() * tag_seq -- done in the wrapper; XLA fuses it with the copy.
    tags = tag_col[:, 0].reshape(B, S)
    return mask.astype(jnp.int32) * tags


if __name__ == "__main__":
    # Small shapes consistent with the module:
    #   projection_dim = 16  -> D = 2 * 16 = 32
    #   label_alphabet_size = 10, then += 2 -> L = 12
    B, S = 2, 8
    proj_dim = 16
    D = 2 * proj_dim
    L = 10 + 2

    key = jax.random.PRNGKey(0)
    k_x, k_w, k_b = jax.random.split(key, 3)

    # "ELMo representations" stand-in (output of the untranslated biLM).
    elmo_repr = jax.random.normal(k_x, (B, S, D), dtype=jnp.float32)

    # hidden2tag parameters (nn.Linear(2*proj_dim, label_alphabet_size+2)).
    W = jax.random.normal(k_w, (D, L), dtype=jnp.float32) * 0.1
    b = jax.random.normal(k_b, (L,), dtype=jnp.float32) * 0.1

    # Token mask: first row fully valid, second row half padded.
    mask = jnp.array([[1] * S, [1] * (S // 2) + [0] * (S - S // 2)], dtype=jnp.int32)

    tag_seq = jax.block_until_ready(elmo_seqlabel_forward(elmo_repr, mask, W, b))

    # Pure-JAX reference with identical numerics (bf16 operands, f32 accumulate).
    xr = elmo_repr.reshape(B * S, D).astype(jnp.bfloat16)
    wr = W.astype(jnp.bfloat16)
    ref_logits = jnp.dot(xr, wr, preferred_element_type=jnp.float32) + b
    ref_tag = jnp.argmax(ref_logits, axis=-1).astype(jnp.int32).reshape(B, S)
    ref_tag = mask * ref_tag

    assert tag_seq.shape == (B, S) and tag_seq.dtype == jnp.int32
    assert bool(jnp.all(tag_seq == ref_tag)), "Pallas output mismatch vs reference"

    print("KERNEL_OK")
</pallas_src>

<mosaic_0001>
module attributes {stable_mosaic.version = 11 : i64} {
  func.func @_seqlabel_kernel(%arg0: i32, %arg1: memref<16x32xf32, #tpu.memory_space<vmem>>, %arg2: memref<32x128xbf16, #tpu.memory_space<vmem>>, %arg3: memref<1x128xf32, #tpu.memory_space<vmem>>, %arg4: memref<16x1xi32, #tpu.memory_space<vmem>>) attributes {dimension_semantics = [#tpu.dimension_semantics<parallel>], iteration_bounds = array<i64: 1>, scalar_prefetch = 0 : i64, scratch_operands = 0 : i64, tpu.core_type = #tpu.core_type<tc>, window_params = [{transform_indices = @transform_0, window_bounds = array<i64: 16, 32>}, {pipeline_mode = #tpu.pipeline_mode<synchronous>, transform_indices = @transform_1, window_bounds = array<i64: 32, 128>}, {pipeline_mode = #tpu.pipeline_mode<synchronous>, transform_indices = @transform_2, window_bounds = array<i64: 1, 128>}, {transform_indices = @transform_3, window_bounds = array<i64: 16, 1>}]} {
    %c0 = arith.constant 0 : index
    %c0_0 = arith.constant 0 : index
    %0 = vector.load %arg1[%c0, %c0_0] : memref<16x32xf32, #tpu.memory_space<vmem>>, vector<16x32xf32>
    %1 = arith.truncf %0 : vector<16x32xf32> to vector<16x32xbf16>
    %c0_1 = arith.constant 0 : index
    %c0_2 = arith.constant 0 : index
    %2 = vector.load %arg2[%c0_1, %c0_2] : memref<32x128xbf16, #tpu.memory_space<vmem>>, vector<32x128xbf16>
    %cst = arith.constant dense<0.000000e+00> : vector<16x128xf32>
    %3 = tpu.matmul %1, %2, %cst {dimension_numbers = #tpu.dot_dimension_numbers<[1], [0], [0], [1], [0, 0, 1, 1], [], []>} : vector<16x32xbf16>, vector<32x128xbf16>, vector<16x128xf32> -> vector<16x128xf32>
    %c0_3 = arith.constant 0 : index
    %c0_4 = arith.constant 0 : index
    %4 = vector.load %arg3[%c0_3, %c0_4] : memref<1x128xf32, #tpu.memory_space<vmem>>, vector<1x128xf32>
    %5 = vector.broadcast %4 : vector<1x128xf32> to vector<16x128xf32>
    %6 = arith.addf %3, %5 : vector<16x128xf32>
    %cst_5 = arith.constant dense<0xFF800000> : vector<16xf32>
    %7 = vector.multi_reduction <maximumf>, %6, %cst_5 [1] : vector<16x128xf32> to vector<16xf32>
    %8 = vector.shape_cast %7 : vector<16xf32> to vector<16x1xf32>
    %9 = tpu.iota {dimensions = array<i32: 1>} : vector<16x128xi32>
    %10 = vector.broadcast %8 : vector<16x1xf32> to vector<16x128xf32>
    %11 = arith.cmpf oeq, %6, %10 : vector<16x128xf32>
    %c128_i32 = arith.constant 128 : i32
    %12 = vector.broadcast %c128_i32 : i32 to vector<16x128xi32>
    %13 = arith.select %11, %9, %12 : vector<16x128xi1>, vector<16x128xi32>
    %cst_6 = arith.constant dense<2147483647> : vector<16xi32>
    %14 = vector.multi_reduction <minsi>, %13, %cst_6 [1] : vector<16x128xi32> to vector<16xi32>
    %15 = vector.shape_cast %14 : vector<16xi32> to vector<16x1xi32>
    %c0_7 = arith.constant 0 : index
    %c0_8 = arith.constant 0 : index
    %16 = vector.load %arg4[%c0_7, %c0_8] : memref<16x1xi32, #tpu.memory_space<vmem>>, vector<16x1xi32>
    tpu.vector_store %arg4[%c0_7, %c0_8], %15 {strides = array<i32>} : memref<16x1xi32, #tpu.memory_space<vmem>>, vector<16x1xi32>,
    return
  }
  func.func @transform_0(%arg0: i32) -> (i32, i32) {
    %c0_i32 = arith.constant 0 : i32
    %c0_i32_0 = arith.constant 0 : i32
    return %arg0, %c0_i32 : i32, i32
  }
  func.func @transform_1(%arg0: i32) -> (i32, i32) {
    %c0_i32 = arith.constant 0 : i32
    %c0_i32_0 = arith.constant 0 : i32
    %c0_i32_1 = arith.constant 0 : i32
    return %c0_i32, %c0_i32_0 : i32, i32
  }
  func.func @transform_2(%arg0: i32) -> (i32, i32) {
    %c0_i32 = arith.constant 0 : i32
    %c0_i32_0 = arith.constant 0 : i32
    %c0_i32_1 = arith.constant 0 : i32
    return %c0_i32, %c0_i32_0 : i32, i32
  }
  func.func @transform_3(%arg0: i32) -> (i32, i32) {
    %c0_i32 = arith.constant 0 : i32
    %c0_i32_0 = arith.constant 0 : i32
    return %arg0, %c0_i32 : i32, i32
  }
}

</mosaic_0001>

<llo_original>
// kernel: tpu_custom_call.1
$region0: #{tpu_custom_call.1}
  #allocation0 [shape = 'u32[]', space=smem, size = 0x4, offset = 0x4, fixed_abs, tag = 'smem constant byte address 0x4 - core index']
  #allocation1 [shape = 'u32[144,128]{1,0:T(1,128)}', space=vmem, size = 0x12000, scoped, tag = 'internal scratch']
  %s0 = inlined_call_operand.hbm [shape: f32[16,32], index: 0, kind: input, shape index: {}]
  %s1 = inlined_call_operand.hbm [shape: bf16[32,128], index: 1, kind: input, shape index: {}]
  %s2 = inlined_call_operand.vmem [shape: f32[1,128], index: 2, kind: input, shape index: {}]
  %s3 = inlined_call_operand.vmem [shape: s32[16,1], index: 3, kind: output, shape index: {}]
  %s4 = sld [smem:[#allocation0]]
  $region30: #{tpu_custom_call.1} parent=0
    _
  %s6 = ssub.s32 1, %s4
  %s7 = scalar_select 0, %s6, %s4
  $region1: #{tpu_custom_call.1} parent=0
    #allocation2 [shape = 'u8[8192]{0}', space=vmem, size = 0x2000, scoped, tag = 'input window, operand 0, single buffered']
    #allocation3 [shape = 's32[1]{0}', space=sflag, size = 0x4, scoped, tag = 'scoped memory for tpu_custom_call.1']
    #allocation4 [shape = 'u8[8192]{0}', space=vmem, size = 0x2000, scoped, tag = 'input window, operand 1, single buffered']
    #allocation5 [shape = 's32[1]{0}', space=sflag, size = 0x4, scoped, tag = 'scoped memory for tpu_custom_call.1']
    %8 = vsyncpa [#allocation3], 0
    %9 = vsyncpa [#allocation5], 0
    // Predicated region
    $region2: #{tpu_custom_call.1} parent=1 // pred_check
      _
    $region3: #{tpu_custom_call.1} parent=1 // pred_check_branch
      %11 = sbr.rel (0) target = $region5
    $region4: #{tpu_custom_call.1} parent=1 // pred_region
      %s13 = ssub.s32 256, 256
      %14 = vsyncadd [#allocation3], %s13
      %s15 = sshll.u32 [#allocation2], 4
      %s16 = int_to_ptr.vmem [resolvable:$true] %s15
      %21 = dma.hbm_to_vmem [thread:$0]  %s0, 256, %s16, [#allocation3], 128, 128, 8
    $region5: #{tpu_custom_call.1} parent=1 // pred_fallthru
      _
    // Predicated region
    $region6: #{tpu_custom_call.1} parent=1 // pred_check
      _
    $region7: #{tpu_custom_call.1} parent=1 // pred_check_branch
      %23 = sbr.rel (0) target = $region9
    $region8: #{tpu_custom_call.1} parent=1 // pred_region
      %s25 = ssub.s32 256, 256
      %26 = vsyncadd [#allocation5], %s25
      %s27 = sshll.u32 [#allocation4], 4
      %s28 = int_to_ptr.vmem [resolvable:$true] %s27
      %33 = dma.hbm_to_vmem [thread:$0]  %s1, 256, %s28, [#allocation5], 64, 64, 4
    $region9: #{tpu_custom_call.1} parent=1 // pred_fallthru
      _
    // Predicated region
    $region10: #{tpu_custom_call.1} parent=1 // pred_check
      _
    $region11: #{tpu_custom_call.1} parent=1 // pred_check_branch
      %35 = sbr.rel (0) target = $region13
    $region12: #{tpu_custom_call.1} parent=1 // pred_region
      _
    $region13: #{tpu_custom_call.1} parent=1 // pred_fallthru
      _
    // Predicated region
    $region14: #{tpu_custom_call.1} parent=1 // pred_check
      _
    $region15: #{tpu_custom_call.1} parent=1 // pred_check_branch
      %37 = sbr.rel (0) target = $region17
    $region16: #{tpu_custom_call.1} parent=1 // pred_region
      %38 = dma.done [#allocation3], 256
    $region17: #{tpu_custom_call.1} parent=1 // pred_fallthru
      _
    // Predicated region
    $region18: #{tpu_custom_call.1} parent=1 // pred_check
      _
    $region19: #{tpu_custom_call.1} parent=1 // pred_check_branch
      %40 = sbr.rel (0) target = $region21
    $region20: #{tpu_custom_call.1} parent=1 // pred_region
      %41 = dma.done [#allocation5], 256
    $region21: #{tpu_custom_call.1} parent=1 // pred_fallthru
      _
    %v43 = vld [vmem:[#allocation2] sm:$0xff]
    %v44 = vld [vmem:[#allocation2 + $0x8] sm:$0xff]
    %v45 = vpack.c.bf16 %v44, %v43
    %v46 = vld [vmem:[#allocation4] sm:$0xf]
    %v47 = vld [vmem:[#allocation4 + $0x4] sm:$0xf]
    %v48 = vld [vmem:[#allocation4 + $0x8] sm:$0xf]
    %v49 = vld [vmem:[#allocation4 + $0xc] sm:$0xf]
    %v50 = vld [vmem:[%s2] sm:$0x1]
    %v52 = vlaneseq
    %v53 = vshrl.u32 %v52, 7
    %v54 = vsub.s32 0, %v53
    %v55 = vrot.slane %v50, %v54
    %v61 = vunpack.c.l.b16 %v46
    %v62 = vunpack.c.l.b16 %v47
    %v63 = vunpack.c.l.b16 %v48
    %v64 = vunpack.c.l.b16 %v49
    %v65 = vpack.c.b16 %v62, %v61
    %v66 = vpack.c.b16 %v64, %v63
    %vm69 = vcmask 261120
    %v71 = vsel %vm69, %v45, 0
    %73 = vmatprep.subr.bf16.mxu0 0
    %74 = vmatpush1.bf16.msra.mxu0 %v65
    %75 = vmatprep.subr.bf16.mxu0 0
    %76 = vmatpush1.bf16.msra.mxu0 %v66
    %77 = vmatprep.subr.bf16.mxu0 0
    %78 = vmatpush1.bf16.msra.mxu0 0
    %79 = vmatprep.subr.bf16.mxu0 0
    %80 = vmatpush1.bf16.msra.mxu0 0
    %81 = vmatprep.subr.bf16.mxu0 0
    %82 = vmatpush1.bf16.msra.mxu0 0
    %83 = vmatprep.subr.bf16.mxu0 0
    %84 = vmatpush1.bf16.msra.mxu0 0
    %85 = vmatprep.subr.bf16.mxu0 0
    %86 = vmatpush1.bf16.msra.mxu0 0
    %87 = vmatprep.subr.bf16.mxu0 0
    %88 = vmatpush1.bf16.msra.mxu0 0
    %89 = vmatprep.subr.bf16.mxu0 0
    %90 = vmatpush1.bf16.msra.mxu0 0
    %91 = vmatprep.subr.bf16.mxu0 0
    %92 = vmatpush1.bf16.msra.mxu0 0
    %93 = vmatprep.subr.bf16.mxu0 0
    %94 = vmatpush1.bf16.msra.mxu0 0
    %95 = vmatprep.subr.bf16.mxu0 0
    %96 = vmatpush1.bf16.msra.mxu0 0
    %97 = vmatprep.subr.bf16.mxu0 0
    %98 = vmatpush1.bf16.msra.mxu0 0
    %99 = vmatprep.subr.bf16.mxu0 0
    %100 = vmatpush1.bf16.msra.mxu0 0
    %101 = vmatprep.subr.bf16.mxu0 0
    %102 = vmatpush1.bf16.msra.mxu0 0
    %103 = vmatprep.subr.bf16.mxu0 0
    %104 = vmatpush1.bf16.msra.mxu0 0
    %105 = vmatprep.mubr.bf16.mxu0 0
    %106 = vmatmul.mubr.bf16.gmra.mrb[0].mxu0 %v71
    %v107 = vpop.f32.mrb[0].mxu0
    %v108 = vadd.f32 %v55, %v107
    %v109 = vpop.f32.mrb[0].mxu0
    %v110 = vpop.f32.mrb[0].mxu0
    %v111 = vadd.f32 %v55, %v110
    %v112 = vpop.f32.mrb[0].mxu0
    %113 = vdwg.mxu0
    %114 = vmax.xlane.f32.xlu0 %v108
    %v115 = vpop.xlane.xlu0 %114
    %116 = vmax.xlane.f32.xlu0 %v111
    %v117 = vpop.xlane.xlu0 %116
    %v118 = vlaneseq
    %v119 = vand.u32 %v118, 127
    %vm120 = vcmp.eq.f32.partialorder %v108, %v115
    %vm121 = vcmp.eq.f32.partialorder %v111, %v117
    %v122 = vsel %vm120, %v119, 128
    %v123 = vsel %vm121, %v119, 128
    %v124 = vand.u32 %v122, 65535
    %v125 = vshra.s32 %v122, 16
    %v126 = vcvt.s32.f32 %v124
    %v127 = vcvt.s32.f32 %v125
    %128 = vmin.xlane.f32.xlu0 %v127
    %v129 = vpop.xlane.xlu0 %128
    %vm130 = vcmp.eq.f32.partialorder %v127, %v129
    %v131 = vsel %vm130, %v126, inf
    %132 = vmin.xlane.f32.xlu0 %v131
    %v133 = vpop.xlane.xlu0 %132
    %v134 = vcvt.f32.s32 %v133
    %v135 = vcvt.f32.s32 %v129
    %v136 = vshll.u32 %v135, 16
    %v137 = vadd.s32 %v136, %v134
    %v138 = vand.u32 %v123, 65535
    %v139 = vshra.s32 %v123, 16
    %v140 = vcvt.s32.f32 %v138
    %v141 = vcvt.s32.f32 %v139
    %142 = vmin.xlane.f32.xlu0 %v141
    %v143 = vpop.xlane.xlu0 %142
    %vm144 = vcmp.eq.f32.partialorder %v141, %v143
    %v145 = vsel %vm144, %v140, inf
    %146 = vmin.xlane.f32.xlu0 %v145
    %v147 = vpop.xlane.xlu0 %146
    %v148 = vcvt.f32.s32 %v147
    %v149 = vcvt.f32.s32 %v143
    %v150 = vshll.u32 %v149, 16
    %v151 = vadd.s32 %v150, %v148
    %vm152 = vcmask 7168
    %153 = vst.msk [vmem:[%s3] sm:$0xff] %vm152, %v137
    %154 = vst.msk [vmem:[%s3 + $0x8] sm:$0xff] %vm152, %v151
    // Predicated region
    $region22: #{tpu_custom_call.1} parent=1 // pred_check
      _
    $region23: #{tpu_custom_call.1} parent=1 // pred_check_branch
      %156 = sbr.rel (0) target = $region25
    $region24: #{tpu_custom_call.1} parent=1 // pred_region
      _
    $region25: #{tpu_custom_call.1} parent=1 // pred_fallthru
      _
    // Predicated region
    $region26: #{tpu_custom_call.1} parent=1 // pred_check
      _
    $region27: #{tpu_custom_call.1} parent=1 // pred_check_branch
      %158 = sbr.rel (0) target = $region29
    $region28: #{tpu_custom_call.1} parent=1 // pred_region
      _
    $region29: #{tpu_custom_call.1} parent=1 // pred_fallthru
      _
    %159 = vsyncpa [#allocation3], 1
    %160 = vsyncpa [#allocation5], 1

</llo_original>
